<compile_context>
chip_gen: v7x
topology: tpu7x:2x2x1
jax: 0.10.0
libtpu: 0.0.40
codegen_flags: <defaults>
</compile_context>

<pallas_src>
import functools

import jax
import jax.numpy as jnp
from jax.experimental import pallas as pl
from jax.experimental.pallas import tpu as pltpu

GAMMA = 1.5
ALPHA = 0.25
LANES = 128
MAX_BLOCK_BYTES = 2 * 1024 * 1024     # per-input streamed block (f32: 4096 rows)
MAX_ROW_TILE = 8192                   # hard cap (bf16 path); bounds f32 temps
VMEM_LIMIT_BYTES = 48 * 1024 * 1024   # double-buffered blocks + compute temps


def _tensorcores_per_chip():
    """2 on multi-TensorCore chips (v7x / v4 / v5p), 1 on single-TC v5e / v6e."""
    try:
        kind = jax.devices()[0].device_kind.lower()
    except Exception:
        return 1
    for tag in ("v5e", "v5 lite", "v5lite", "v6e", "v6 lite", "v6lite"):
        if tag in kind:
            return 1
    return 2


def _vmem_limit_bytes():
    """Requested scoped-VMEM limit, clamped to 3/4 of the chip's capacity."""
    try:
        cap = int(pltpu.get_tpu_info().vmem_capacity_bytes)
    except Exception:
        cap = 128 * 1024 * 1024
    return min(VMEM_LIMIT_BYTES, (3 * cap) // 4)


def _focal_loss_kernel(pred_ref, true_ref, out_ref, acc_ref, *,
                       gamma, alpha, n_valid, blocks_per_core, num_blocks,
                       last_block_partial, has_overrun):
    c = pl.program_id(0)
    i = pl.program_id(1)
    blk = c * blocks_per_core + i

    # Zero the per-core accumulator at the start of each core's sub-grid.
    @pl.when(i == 0)
    def _():
        acc_ref[...] = jnp.zeros_like(acc_ref)

    def accumulate(mask_tail):
        x = pred_ref[...].astype(jnp.float32)
        y = true_ref[...].astype(jnp.float32)
        rt, cols = x.shape

        # One exp per element, reused by the BCE log term and the sigmoid.
        e = jnp.exp(-jnp.abs(x))
        d = 1.0 + e

        # BCEWithLogitsLoss (reduction='none'), numerically stable form:
        #   max(x, 0) - x*y + log(1 + exp(-|x|))      (log(d): d is reused)
        bce = jnp.maximum(x, 0.0) - x * y + jnp.log(d)

        # sigmoid(|x|) = 1/(1+e); approx EUP reciprocal (no Newton step) is
        # within the tolerance needed for the focal modulation term.
        r = pl.reciprocal(d, approx=True)
        pred_prob = jnp.where(x >= 0.0, r, 1.0 - r)

        # alpha_factor = y*a + (1-y)*(1-a)      -> (1-a) + y*(2a-1)   (one FMA)
        # 1 - p_t     = 1 - [y*p + (1-y)*(1-p)] -> p + y*(1-2p)       (one FMA)
        alpha_factor = (1.0 - alpha) + y * (2.0 * alpha - 1.0)
        one_m_pt = pred_prob + y * (1.0 - 2.0 * pred_prob)
        # Approx reciprocal may overshoot p just past [0,1]; never feed sqrt
        # a negative argument.
        one_m_pt = jnp.maximum(one_m_pt, 0.0)

        if gamma == 1.5:
            modulating = one_m_pt * jnp.sqrt(one_m_pt)   # (1-p_t)**1.5
        elif gamma == 1.0:
            modulating = one_m_pt
        elif gamma == 2.0:
            modulating = one_m_pt * one_m_pt
        elif gamma == 0.0:
            modulating = jnp.ones_like(one_m_pt)
        else:
            # pow lowers to exp(g*log(.)); clamp away log(0) = -inf.
            modulating = jnp.maximum(one_m_pt, 1e-30) ** gamma

        loss = bce * alpha_factor * modulating

        if mask_tail:
            # Only the single partial tail block runs this.  Compare row and
            # lane separately: no 32-bit flat-index overflow (valid to ~2^38).
            row = blk * rt + jax.lax.broadcasted_iota(jnp.int32, (rt, cols), 0)
            lane = jax.lax.broadcasted_iota(jnp.int32, (rt, cols), 1)
            last_row = (n_valid - 1) // cols
            last_lane = (n_valid - 1) % cols
            valid = (row < last_row) | ((row == last_row) & (lane <= last_lane))
            loss = jnp.where(valid, loss, 0.0)

        # Vreg-shaped partial sum: pure VPU adds per step, no cross-lane
        # reduce.  f32 accumulation error grows slowly with #blocks; fine for
        # loss-sized magnitudes.
        rem = rt % 8
        if rem:
            loss = jnp.concatenate(
                [loss, jnp.zeros((8 - rem, cols), loss.dtype)], axis=0)
        acc_ref[...] += loss.reshape(-1, 8, cols).sum(axis=0)

    if last_block_partial:
        # Full blocks: unmasked.  Tail block: masked.  Overrun blocks
        # (blk >= num_blocks, clamped duplicates from the core split): skipped.
        @pl.when(blk < num_blocks - 1)
        def _():
            accumulate(False)

        @pl.when(blk == num_blocks - 1)
        def _():
            accumulate(True)
    elif has_overrun:
        @pl.when(blk < num_blocks)
        def _():
            accumulate(False)
    else:
        accumulate(False)

    # One lane-dense store of the raw per-core accumulator on the core's last
    # step; the tiny (num_cores*8*128 element) reduce finishes host-side.
    @pl.when(i == pl.num_programs(1) - 1)
    def _():
        out_ref[0] = acc_ref[...]


def focal_loss(pred, true, gamma=GAMMA, alpha=ALPHA):
    """FocalLoss(nn.BCEWithLogitsLoss())(pred, true) with 'mean' reduction."""
    assert pred.shape == true.shape
    n = pred.size  # Python int
    assert n > 0

    # Flatten row-major (metadata-only reshape); stream in the native dtype
    # (bf16 inputs halve HBM traffic and get a 2x taller row tile below).
    pred_flat = pred.reshape(-1)
    true_flat = true.reshape(-1)

    rows = pl.cdiv(n, LANES)
    padded_n = rows * LANES
    if padded_n != n:
        # TODO(synk): ragged tail (n % 128 != 0) still needs a one-off pad to
        # make the 2D reshape legal; pad values are masked in the tail block.
        pred_flat = jnp.pad(pred_flat, (0, padded_n - n))
        true_flat = jnp.pad(true_flat, (0, padded_n - n))
    pred2d = pred_flat.reshape(rows, LANES)
    true2d = true_flat.reshape(rows, LANES)

    # ~2 MiB lane-dense blocks per input (dtype-aware row count); a full-extent
    # block when the input is small.
    itemsize = max(jnp.dtype(pred2d.dtype).itemsize,
                   jnp.dtype(true2d.dtype).itemsize)
    max_rows = min(MAX_ROW_TILE, max(8, MAX_BLOCK_BYTES // (LANES * itemsize)))
    row_tile = rows if rows <= max_rows else max_rows
    num_blocks = pl.cdiv(rows, row_tile)

    num_cores = min(_tensorcores_per_chip(), num_blocks)
    blocks_per_core = pl.cdiv(num_blocks, num_cores)

    last_block_partial = (num_blocks * row_tile * LANES) != n
    has_overrun = (num_cores * blocks_per_core) != num_blocks

    def in_map(c, i):
        blk = c * blocks_per_core + i
        # Clamp keeps the (rare) overrun tail steps of the core split legal;
        # their compute is skipped in-kernel.
        return (jnp.minimum(blk, num_blocks - 1), 0)

    kernel = functools.partial(
        _focal_loss_kernel, gamma=gamma, alpha=alpha, n_valid=n,
        blocks_per_core=blocks_per_core, num_blocks=num_blocks,
        last_block_partial=last_block_partial, has_overrun=has_overrun)

    bytes_accessed = n * 2 * itemsize + num_cores * 8 * LANES * 4

    # NOTE: pipeline_mode=pl.Buffered(3) on the input specs is an optional
    # low-single-digit-% knob once blocks are this large; left at the default
    # double-buffering to keep the VMEM footprint conservative.
    partials = pl.pallas_call(
        kernel,
        out_shape=jax.ShapeDtypeStruct((num_cores, 8, LANES), jnp.float32),
        grid_spec=pltpu.PrefetchScalarGridSpec(
            num_scalar_prefetch=0,
            grid=(num_cores, blocks_per_core),
            in_specs=[
                pl.BlockSpec((row_tile, LANES), in_map),
                pl.BlockSpec((row_tile, LANES), in_map),
            ],
            out_specs=pl.BlockSpec((1, 8, LANES), lambda c, i: (c, 0, 0)),
            scratch_shapes=[pltpu.VMEM((8, LANES), jnp.float32)],
        ),
        compiler_params=pltpu.CompilerParams(
            dimension_semantics=("parallel", "arbitrary"),
            vmem_limit_bytes=_vmem_limit_bytes()),
        cost_estimate=pl.CostEstimate(
            flops=20 * n, transcendentals=4 * n, bytes_accessed=bytes_accessed),
    )(pred2d, true2d)

    # Original reduction of nn.BCEWithLogitsLoss() is 'mean'.
    return jnp.sum(partials) / jnp.float32(n)


def focal_loss_ref(pred, true, gamma=GAMMA, alpha=ALPHA):
    """Pure-JAX reference mirroring the PyTorch module."""
    x = pred.astype(jnp.float32)
    y = true.astype(jnp.float32)
    bce = jnp.maximum(x, 0.0) - x * y + jnp.log1p(jnp.exp(-jnp.abs(x)))
    p = jax.nn.sigmoid(x)
    p_t = y * p + (1.0 - y) * (1.0 - p)
    alpha_factor = y * alpha + (1.0 - y) * (1.0 - alpha)
    modulating = (1.0 - p_t) ** gamma
    return (bce * alpha_factor * modulating).mean()


if __name__ == "__main__":
    key = jax.random.PRNGKey(0)
    k1, k2 = jax.random.split(key)

    # Small NCHW-shaped logits / targets, consistent with a detection head.
    B, C, H, W = 2, 4, 16, 16
    pred = jax.random.normal(k1, (B, C, H, W), dtype=jnp.float32) * 2.0
    true = (jax.random.uniform(k2, (B, C, H, W)) > 0.7).astype(jnp.float32)

    out = jax.block_until_ready(focal_loss(pred, true))
    ref = focal_loss_ref(pred, true)

    # Tolerance covers the approx-reciprocal (EUP) sigmoid path and the
    # different partial-sum ordering vs. jnp.mean.
    assert jnp.allclose(out, ref, rtol=5e-3, atol=1e-6), (out, ref)

    print("KERNEL_OK")
</pallas_src>

<mosaic_0001>
module attributes {stable_mosaic.version = 11 : i64} {
  func.func @_focal_loss_kernel(%arg0: i32, %arg1: i32, %arg2: memref<16x128xf32, #tpu.memory_space<vmem>>, %arg3: memref<16x128xf32, #tpu.memory_space<vmem>>, %arg4: memref<1x8x128xf32, #tpu.memory_space<vmem>>, %arg5: memref<8x128xf32, #tpu.memory_space<vmem>>) attributes {dimension_semantics = [#tpu.dimension_semantics<parallel>, #tpu.dimension_semantics<arbitrary>], iteration_bounds = array<i64: 1, 1>, scalar_prefetch = 0 : i64, scratch_operands = 1 : i64, tpu.core_type = #tpu.core_type<tc>, window_params = [{transform_indices = @transform_0, window_bounds = array<i64: 16, 128>}, {transform_indices = @transform_1, window_bounds = array<i64: 16, 128>}, {transform_indices = @transform_2, window_bounds = array<i64: 1, 8, 128>}]} {
    %c0_i32 = arith.constant 0 : i32
    %0 = arith.cmpi eq, %arg1, %c0_i32 : i32
    %1 = arith.extui %0 : i1 to i32
    %c0_i32_0 = arith.constant 0 : i32
    %2 = arith.cmpi ne, %1, %c0_i32_0 : i32
    scf.if %2 {
      %cst_20 = arith.constant 0.000000e+00 : f32
      %47 = vector.broadcast %cst_20 : f32 to vector<8x128xf32>
      %c0_21 = arith.constant 0 : index
      %c0_22 = arith.constant 0 : index
      %48 = vector.load %arg5[%c0_21, %c0_22] : memref<8x128xf32, #tpu.memory_space<vmem>>, vector<8x128xf32>
      tpu.vector_store %arg5[%c0_21, %c0_22], %47 {strides = array<i32>} : memref<8x128xf32, #tpu.memory_space<vmem>>, vector<8x128xf32>,
    } else {
    }
    %c0 = arith.constant 0 : index
    %c0_1 = arith.constant 0 : index
    %3 = vector.load %arg2[%c0, %c0_1] : memref<16x128xf32, #tpu.memory_space<vmem>>, vector<16x128xf32>
    %c0_2 = arith.constant 0 : index
    %c0_3 = arith.constant 0 : index
    %4 = vector.load %arg3[%c0_2, %c0_3] : memref<16x128xf32, #tpu.memory_space<vmem>>, vector<16x128xf32>
    %5 = math.absf %3 : vector<16x128xf32>
    %cst = arith.constant 0.000000e+00 : f32
    %6 = vector.broadcast %cst : f32 to vector<16x128xf32>
    %7 = arith.subf %6, %5 : vector<16x128xf32>
    %8 = math.exp %7 : vector<16x128xf32>
    %cst_4 = arith.constant 1.000000e+00 : f32
    %9 = vector.broadcast %cst_4 : f32 to vector<16x128xf32>
    %10 = arith.addf %9, %8 : vector<16x128xf32>
    %cst_5 = arith.constant 0.000000e+00 : f32
    %11 = vector.broadcast %cst_5 : f32 to vector<16x128xf32>
    %12 = arith.maximumf %3, %11 : vector<16x128xf32>
    %13 = arith.mulf %3, %4 : vector<16x128xf32>
    %14 = arith.subf %12, %13 : vector<16x128xf32>
    %15 = math.log %10 : vector<16x128xf32>
    %16 = arith.addf %14, %15 : vector<16x128xf32>
    %17 = tpu.reciprocal %10 {approx = true} : vector<16x128xf32> -> vector<16x128xf32>
    %cst_6 = arith.constant 0.000000e+00 : f32
    %18 = vector.broadcast %cst_6 : f32 to vector<16x128xf32>
    %19 = arith.cmpf oge, %3, %18 : vector<16x128xf32>
    %cst_7 = arith.constant 1.000000e+00 : f32
    %20 = vector.broadcast %cst_7 : f32 to vector<16x128xf32>
    %21 = arith.subf %20, %17 : vector<16x128xf32>
    %22 = arith.select %19, %17, %21 : vector<16x128xi1>, vector<16x128xf32>
    %cst_8 = arith.constant -5.000000e-01 : f32
    %23 = vector.broadcast %cst_8 : f32 to vector<16x128xf32>
    %24 = arith.mulf %4, %23 : vector<16x128xf32>
    %cst_9 = arith.constant 7.500000e-01 : f32
    %25 = vector.broadcast %cst_9 : f32 to vector<16x128xf32>
    %26 = arith.addf %25, %24 : vector<16x128xf32>
    %cst_10 = arith.constant 2.000000e+00 : f32
    %27 = vector.broadcast %cst_10 : f32 to vector<16x128xf32>
    %28 = arith.mulf %27, %22 : vector<16x128xf32>
    %cst_11 = arith.constant 1.000000e+00 : f32
    %29 = vector.broadcast %cst_11 : f32 to vector<16x128xf32>
    %30 = arith.subf %29, %28 : vector<16x128xf32>
    %31 = arith.mulf %4, %30 : vector<16x128xf32>
    %32 = arith.addf %22, %31 : vector<16x128xf32>
    %cst_12 = arith.constant 0.000000e+00 : f32
    %33 = vector.broadcast %cst_12 : f32 to vector<16x128xf32>
    %34 = arith.maximumf %32, %33 : vector<16x128xf32>
    %35 = math.sqrt %34 : vector<16x128xf32>
    %36 = arith.mulf %34, %35 : vector<16x128xf32>
    %37 = arith.mulf %16, %26 : vector<16x128xf32>
    %38 = arith.mulf %37, %36 : vector<16x128xf32>
    %c0_13 = arith.constant 0 : index
    %c0_14 = arith.constant 0 : index
    %39 = vector.load %arg5[%c0_13, %c0_14] : memref<8x128xf32, #tpu.memory_space<vmem>>, vector<8x128xf32>
    %40 = vector.shape_cast %38 : vector<16x128xf32> to vector<2x8x128xf32>
    %cst_15 = arith.constant dense<0.000000e+00> : vector<8x128xf32>
    %41 = vector.multi_reduction <add>, %40, %cst_15 [0] : vector<2x8x128xf32> to vector<8x128xf32>
    %42 = arith.addf %39, %41 : vector<8x128xf32>
    %c0_16 = arith.constant 0 : index
    %c0_17 = arith.constant 0 : index
    %43 = vector.load %arg5[%c0_16, %c0_17] : memref<8x128xf32, #tpu.memory_space<vmem>>, vector<8x128xf32>
    tpu.vector_store %arg5[%c0_16, %c0_17], %42 {strides = array<i32>} : memref<8x128xf32, #tpu.memory_space<vmem>>, vector<8x128xf32>,
    %c0_i32_18 = arith.constant 0 : i32
    %44 = arith.cmpi eq, %arg1, %c0_i32_18 : i32
    %45 = arith.extui %44 : i1 to i32
    %c0_i32_19 = arith.constant 0 : i32
    %46 = arith.cmpi ne, %45, %c0_i32_19 : i32
    scf.if %46 {
      %c0_20 = arith.constant 0 : index
      %c0_21 = arith.constant 0 : index
      %47 = vector.load %arg5[%c0_20, %c0_21] : memref<8x128xf32, #tpu.memory_space<vmem>>, vector<8x128xf32>
      %c0_22 = arith.constant 0 : index
      %c0_23 = arith.constant 0 : index
      %c0_24 = arith.constant 0 : index
      %48 = vector.load %arg4[%c0_22, %c0_23, %c0_24] : memref<1x8x128xf32, #tpu.memory_space<vmem>>, vector<1x8x128xf32>
      %49 = vector.shape_cast %48 : vector<1x8x128xf32> to vector<8x128xf32>
      %50 = vector.shape_cast %47 : vector<8x128xf32> to vector<1x8x128xf32>
      tpu.vector_store %arg4[%c0_22, %c0_23, %c0_24], %50 {strides = array<i32>} : memref<1x8x128xf32, #tpu.memory_space<vmem>>, vector<1x8x128xf32>,
    } else {
    }
    return
  }
  func.func @transform_0(%arg0: i32, %arg1: i32) -> (i32, i32) {
    %c1_i32 = arith.constant 1 : i32
    %0 = arith.muli %arg0, %c1_i32 : i32
    %1 = arith.addi %0, %arg1 : i32
    %c0_i32 = arith.constant 0 : i32
    %2 = arith.minsi %1, %c0_i32 : i32
    %c0_i32_0 = arith.constant 0 : i32
    %c0_i32_1 = arith.constant 0 : i32
    return %2, %c0_i32_0 : i32, i32
  }
  func.func @transform_1(%arg0: i32, %arg1: i32) -> (i32, i32) {
    %c1_i32 = arith.constant 1 : i32
    %0 = arith.muli %arg0, %c1_i32 : i32
    %1 = arith.addi %0, %arg1 : i32
    %c0_i32 = arith.constant 0 : i32
    %2 = arith.minsi %1, %c0_i32 : i32
    %c0_i32_0 = arith.constant 0 : i32
    %c0_i32_1 = arith.constant 0 : i32
    return %2, %c0_i32_0 : i32, i32
  }
  func.func @transform_2(%arg0: i32, %arg1: i32) -> (i32, i32, i32) {
    %c0_i32 = arith.constant 0 : i32
    %c0_i32_0 = arith.constant 0 : i32
    %c0_i32_1 = arith.constant 0 : i32
    return %arg0, %c0_i32, %c0_i32_0 : i32, i32, i32
  }
}

</mosaic_0001>

<llo_original>
// kernel: tpu_custom_call.1
$region0: #{tpu_custom_call.1}
  #allocation0 [shape = 'u32[]', space=smem, size = 0x4, offset = 0x4, fixed_abs, tag = 'smem constant byte address 0x4 - core index']
  #allocation1 [shape = 'u32[144,128]{1,0:T(1,128)}', space=vmem, size = 0x12000, scoped, tag = 'internal scratch']
  #allocation2 [shape = 'f32[8,128]{1,0:T(8,128)}', space=vmem, size = 0x1000, scoped, tag = 'scratch operand']
  %s0 = inlined_call_operand.hbm [shape: f32[16,128], index: 0, kind: input, shape index: {}]
  %s1 = inlined_call_operand.hbm [shape: f32[16,128], index: 1, kind: input, shape index: {}]
  %s2 = inlined_call_operand.hbm [shape: f32[1,8,128], index: 2, kind: output, shape index: {}]
  %s3 = sld [smem:[#allocation0]]
  $region34: #{tpu_custom_call.1} parent=0
    _
  %s5 = ssub.s32 1, %s3
  %s6 = scalar_select 0, %s5, %s3
  $region1: #{tpu_custom_call.1} parent=0
    #allocation3 [shape = 'u8[8192]{0}', space=vmem, size = 0x2000, scoped, tag = 'input window, operand 0, single buffered']
    #allocation4 [shape = 's32[1]{0}', space=sflag, size = 0x4, scoped, tag = 'scoped memory for tpu_custom_call.1']
    #allocation5 [shape = 's32[1]{0}', space=sflag, size = 0x4, scoped, tag = 'scoped memory for tpu_custom_call.1']
    #allocation6 [shape = 'u8[8192]{0}', space=vmem, size = 0x2000, scoped, tag = 'input window, operand 1, single buffered']
    #allocation7 [shape = 's32[1]{0}', space=sflag, size = 0x4, scoped, tag = 'scoped memory for tpu_custom_call.1']
    #allocation8 [shape = 'u8[4096]{0}', space=vmem, size = 0x1000, scoped, tag = 'output window, operand 0, single buffered']
    %7 = vsyncpa [#allocation4], 0
    %8 = vsyncpa [#allocation7], 0
    %9 = vsyncpa [#allocation5], 0
    // Predicated region
    $region2: #{tpu_custom_call.1} parent=1 // pred_check
      _
    $region3: #{tpu_custom_call.1} parent=1 // pred_check_branch
      %11 = sbr.rel (0) target = $region5
    $region4: #{tpu_custom_call.1} parent=1 // pred_region
      %s12 = sadd.s32 0, 0
      %p13 = scmp.lt.s32.totalorder %s12, 0
      %s14 = scalar_select %p13, %s12, 0
      %s15 = smul.u32 2, %s14
      %s17 = ssub.s32 256, 256
      %18 = vsyncadd [#allocation4], %s17
      %s19 = smul.addr %s15, 128
      %s20 = scalar_lea.hbm %s0, %s19
      %s21 = sshll.u32 [#allocation3], 4
      %s22 = int_to_ptr.vmem [resolvable:$true] %s21
      %27 = dma.hbm_to_vmem [thread:$0]  %s20, 256, %s22, [#allocation4], 128, 128, 8
    $region5: #{tpu_custom_call.1} parent=1 // pred_fallthru
      _
    // Predicated region
    $region6: #{tpu_custom_call.1} parent=1 // pred_check
      _
    $region7: #{tpu_custom_call.1} parent=1 // pred_check_branch
      %29 = sbr.rel (0) target = $region9
    $region8: #{tpu_custom_call.1} parent=1 // pred_region
      %s30 = sadd.s32 0, 0
      %p31 = scmp.lt.s32.totalorder %s30, 0
      %s32 = scalar_select %p31, %s30, 0
      %s33 = smul.u32 2, %s32
      %s35 = ssub.s32 256, 256
      %36 = vsyncadd [#allocation7], %s35
      %s37 = smul.addr %s33, 128
      %s38 = scalar_lea.hbm %s1, %s37
      %s39 = sshll.u32 [#allocation6], 4
      %s40 = int_to_ptr.vmem [resolvable:$true] %s39
      %45 = dma.hbm_to_vmem [thread:$0]  %s38, 256, %s40, [#allocation7], 128, 128, 8
    $region9: #{tpu_custom_call.1} parent=1 // pred_fallthru
      _
    // Predicated region
    $region10: #{tpu_custom_call.1} parent=1 // pred_check
      _
    $region11: #{tpu_custom_call.1} parent=1 // pred_check_branch
      %47 = sbr.rel (0) target = $region13
    $region12: #{tpu_custom_call.1} parent=1 // pred_region
      %48 = dma.done [#allocation4], 256
    $region13: #{tpu_custom_call.1} parent=1 // pred_fallthru
      _
    // Predicated region
    $region14: #{tpu_custom_call.1} parent=1 // pred_check
      _
    $region15: #{tpu_custom_call.1} parent=1 // pred_check_branch
      %50 = sbr.rel (0) target = $region17
    $region16: #{tpu_custom_call.1} parent=1 // pred_region
      %51 = dma.done [#allocation7], 256
    $region17: #{tpu_custom_call.1} parent=1 // pred_fallthru
      _
    %s52 = sadd.s32 0, 0
    %p53 = scmp.lt.s32.totalorder %s52, 0
    %s54 = scalar_select %p53, %s52, 0
    %s55 = smul.u32 2, %s54
    %s56 = sadd.s32 0, 0
    %p57 = scmp.lt.s32.totalorder %s56, 0
    %s58 = scalar_select %p57, %s56, 0
    %s59 = smul.u32 2, %s58
    %p60 = scmp.eq.s32.totalorder 0, 0
    // Predicated region
    $region18: #{tpu_custom_call.1} parent=1 // pred_check
      %p61 = pneg %p60
    $region19: #{tpu_custom_call.1} parent=1 // pred_check_branch
      %63 = sbr.rel (%p61) target = $region21
    $region20: #{tpu_custom_call.1} parent=1 // pred_region
      %64 = vst [vmem:[#allocation2] sm:$0xff] 0.0
    $region21: #{tpu_custom_call.1} parent=1 // pred_fallthru
      _
    %v65 = vld [vmem:[#allocation3] sm:$0xff]
    %v66 = vld [vmem:[#allocation3 + $0x8] sm:$0xff]
    %v67 = vld [vmem:[#allocation6] sm:$0xff]
    %v68 = vld [vmem:[#allocation6 + $0x8] sm:$0xff]
    %v69 = vand.u32 2147483647, %v65
    %v70 = vand.u32 2147483647, %v66
    %v71 = vsub.f32 0.0, %v69
    %v72 = vsub.f32 0.0, %v70
    %v73 = vmul.f32 %v71, 1.442695
    %v74 = vpow.pop %v73
    %v75 = vmul.f32 %v72, 1.442695
    %v76 = vpow.pop %v75
    %v77 = vadd.f32 %v74, 1.0
    %v78 = vadd.f32 %v76, 1.0
    %v79 = vmax.f32 %v65, 0.0
    %v80 = vmax.f32 %v66, 0.0
    %v81 = vmul.f32 %v65, %v67
    %v82 = vmul.f32 %v66, %v68
    %v83 = vsub.f32 %v79, %v81
    %v84 = vsub.f32 %v80, %v82
    %v85 = vlog2.pop %v77
    %v86 = vmul.f32 %v85, 0.6931472
    %v87 = vlog2.pop %v78
    %v88 = vmul.f32 %v87, 0.6931472
    %v89 = vadd.f32 %v83, %v86
    %v90 = vadd.f32 %v84, %v88
    %v91 = vrcp.pop %v77
    %v92 = vrcp.pop %v78
    %vm93 = vcmp.ge.f32.partialorder %v65, 0.0
    %vm94 = vcmp.ge.f32.partialorder %v66, 0.0
    %v95 = vsub.f32 1.0, %v91
    %v96 = vsub.f32 1.0, %v92
    %v97 = vsel %vm93, %v91, %v95
    %v98 = vsel %vm94, %v92, %v96
    %v99 = vmul.f32 %v67, -0.5
    %v100 = vmul.f32 %v68, -0.5
    %v101 = vadd.f32 %v99, 0.75
    %v102 = vadd.f32 %v100, 0.75
    %v103 = vmul.f32 %v97, 2.0
    %v104 = vmul.f32 %v98, 2.0
    %v105 = vsub.f32 1.0, %v103
    %v106 = vsub.f32 1.0, %v104
    %v107 = vmul.f32 %v67, %v105
    %v108 = vmul.f32 %v68, %v106
    %v109 = vadd.f32 %v97, %v107
    %v110 = vadd.f32 %v98, %v108
    %v111 = vmax.f32 %v109, 0.0
    %v112 = vmax.f32 %v110, 0.0
    %v113 = vrsqrt.pop %v111
    %v114 = vmul.f32 %v111, %v113
    %vm115 = vcmp.eq.f32.partialorder %v111, inf
    %v116 = vsel %vm115, %v111, %v114
    %vm117 = vcmp.eq.f32.partialorder %v111, 0.0
    %v118 = vand.u32 %v111, 2147483648
    %v119 = vsel %vm117, %v118, %v116
    %v120 = vrsqrt.pop %v112
    %v121 = vmul.f32 %v112, %v120
    %vm122 = vcmp.eq.f32.partialorder %v112, inf
    %v123 = vsel %vm122, %v112, %v121
    %vm124 = vcmp.eq.f32.partialorder %v112, 0.0
    %v125 = vand.u32 %v112, 2147483648
    %v126 = vsel %vm124, %v125, %v123
    %v127 = vmul.f32 %v111, %v119
    %v128 = vmul.f32 %v112, %v126
    %v129 = vmul.f32 %v89, %v101
    %v130 = vmul.f32 %v90, %v102
    %v131 = vmul.f32 %v129, %v127
    %v132 = vmul.f32 %v130, %v128
    %v133 = vld [vmem:[#allocation2] sm:$0xff]
    %v134 = vadd.f32 %v131, %v132
    %v135 = vadd.f32 %v133, %v134
    %136 = vst [vmem:[#allocation2] sm:$0xff] %v135
    // Predicated region
    $region22: #{tpu_custom_call.1} parent=1 // pred_check
      %p137 = pneg %p60
    $region23: #{tpu_custom_call.1} parent=1 // pred_check_branch
      %139 = sbr.rel (%p137) target = $region25
    $region24: #{tpu_custom_call.1} parent=1 // pred_region
      %v140 = vld [vmem:[#allocation2] sm:$0xff]
      %141 = vst [vmem:[#allocation8] sm:$0xff] %v140
    $region25: #{tpu_custom_call.1} parent=1 // pred_fallthru
      _
    // Predicated region
    $region26: #{tpu_custom_call.1} parent=1 // pred_check
      _
    $region27: #{tpu_custom_call.1} parent=1 // pred_check_branch
      %143 = sbr.rel (0) target = $region29
    $region28: #{tpu_custom_call.1} parent=1 // pred_region
      %s145 = ssub.s32 128, 128
      %146 = vsyncadd [#allocation5], %s145
      %s148 = sshll.u32 [#allocation8], 4
      %s149 = int_to_ptr.vmem [resolvable:$true] %s148
      %151 = dma.vmem_to_hbm [thread:$0]  %s149, 128, %s2, [#allocation5]
    $region29: #{tpu_custom_call.1} parent=1 // pred_fallthru
      _
    // Predicated region
    $region30: #{tpu_custom_call.1} parent=1 // pred_check
      _
    $region31: #{tpu_custom_call.1} parent=1 // pred_check_branch
      %153 = sbr.rel (0) target = $region33
    $region32: #{tpu_custom_call.1} parent=1 // pred_region
      %154 = dma.done [#allocation5], 128
    $region33: #{tpu_custom_call.1} parent=1 // pred_fallthru
      _
    %155 = vsyncpa [#allocation4], 1
    %156 = vsyncpa [#allocation7], 1
    %157 = vsyncpa [#allocation5], 1

</llo_original>
